<compile_context>
chip_gen: v7x
topology: tpu7x:2x2x1
jax: 0.10.0
libtpu: 0.0.40
codegen_flags: <defaults>
</compile_context>

<pallas_src>
import jax
import jax.numpy as jnp
from jax.experimental import pallas as pl
from jax.experimental.pallas import tpu as pltpu

_PAD_CLASSES = 8      # padded width of the final layer (full-array last dim)
_NEG_BIAS = -1e30     # bias on padded logit lanes -> exp underflows to 0


def _round_up(x, m):
    return (x + m - 1) // m * m


def _classifier_kernel(x_ref, w1_ref, b1_ref, w2_ref, b2_ref,
                       w3_ref, b3_ref, w4_ref, b4_ref, out_ref):
    # Layer 1: Linear(D -> 512) + ReLU.  x arrives f32; the bf16 cast is VPU
    # work hidden under the MXU.  Accumulation / bias / ReLU stay f32.
    h = jnp.dot(x_ref[...].astype(jnp.bfloat16), w1_ref[...],
                preferred_element_type=jnp.float32)
    h = jnp.maximum(h + b1_ref[...], 0.0)

    # Layer 2: Linear(512 -> 256) + ReLU
    h = jnp.dot(h.astype(jnp.bfloat16), w2_ref[...],
                preferred_element_type=jnp.float32)
    h = jnp.maximum(h + b2_ref[...], 0.0)

    # Layer 3: Linear(256 -> 128) + ReLU
    h = jnp.dot(h.astype(jnp.bfloat16), w3_ref[...],
                preferred_element_type=jnp.float32)
    h = jnp.maximum(h + b3_ref[...], 0.0)

    # Layer 4: Linear(128 -> 3), padded to 8 output lanes (zero weight,
    # -1e30 bias on the padded lanes).
    logits = jnp.dot(h.astype(jnp.bfloat16), w4_ref[...],
                     preferred_element_type=jnp.float32) + b4_ref[...]

    # Softmax over the lane dim.  Padded lanes contribute exp(.) == 0, so the
    # normalization over 8 lanes equals the softmax over the 3 real classes.
    m = jnp.max(logits, axis=-1, keepdims=True)        # XLU lane reduce
    e = jnp.exp(logits - m)                             # EUP
    denom = jnp.sum(e, axis=-1, keepdims=True)          # XLU lane reduce
    out_ref[...] = (e / denom).astype(out_ref.dtype)    # exact f32 division


def prepare_params(params):
    """One-time weight prep (hoisted out of the forward pass).

    Casts the matmul operands to bf16 and pads the final layer to
    _PAD_CLASSES output lanes.  Biases stay f32.
    """
    n_classes = params["w4"].shape[1]
    w4 = jnp.zeros((params["w4"].shape[0], _PAD_CLASSES), jnp.bfloat16)
    w4 = w4.at[:, :n_classes].set(params["w4"].astype(jnp.bfloat16))
    b4 = jnp.full((1, _PAD_CLASSES), _NEG_BIAS, jnp.float32)
    b4 = b4.at[:, :n_classes].set(params["b4"])
    return {
        "w1": params["w1"].astype(jnp.bfloat16), "b1": params["b1"],
        "w2": params["w2"].astype(jnp.bfloat16), "b2": params["b2"],
        "w3": params["w3"].astype(jnp.bfloat16), "b3": params["b3"],
        "w4": w4, "b4": b4,
        "n_classes": int(n_classes),
    }


def classifier_forward(x, prep):
    """x: (B, input_dim) float32. prep: output of prepare_params()."""
    B, D = x.shape
    n_classes = prep["n_classes"]

    # Batch tile: large enough to amortize per-grid-step overhead and MXU
    # weight staging, small enough for v5e's 16 MiB default scoped VMEM.
    tile_b = 512
    b_pad = _round_up(B, 8)                    # f32 sublane packing
    if b_pad <= tile_b:
        # Small batch: split into (up to) two tiles so v7x's two TensorCores
        # both get work; a single tile is used only when B <= 8.
        tile_b = _round_up(-(-b_pad // 2), 8) if b_pad >= 16 else b_pad
    b_pad = _round_up(b_pad, tile_b)

    # Only pad rows when needed (padded rows are sliced off below).
    x_in = x if b_pad == B else jnp.zeros((b_pad, D), x.dtype).at[:B].set(x)

    grid = (b_pad // tile_b,)
    const = lambda shape: pl.BlockSpec(shape, lambda i: (0,) * len(shape))

    h1 = prep["w1"].shape[1]
    h2 = prep["w2"].shape[1]
    h3 = prep["w3"].shape[1]
    flops = 2 * b_pad * (D * h1 + h1 * h2 + h2 * h3 + h3 * _PAD_CLASSES)
    weight_bytes = 2 * (prep["w1"].size + prep["w2"].size
                        + prep["w3"].size + prep["w4"].size) \
        + 4 * (prep["b1"].size + prep["b2"].size
               + prep["b3"].size + prep["b4"].size)
    cost = pl.CostEstimate(
        flops=int(flops),
        transcendentals=int(b_pad * _PAD_CLASSES),
        bytes_accessed=int(4 * b_pad * D + weight_bytes
                           + 4 * b_pad * _PAD_CLASSES),
    )

    out = pl.pallas_call(
        _classifier_kernel,
        out_shape=jax.ShapeDtypeStruct((b_pad, _PAD_CLASSES), jnp.float32),
        grid=grid,
        in_specs=[
            pl.BlockSpec((tile_b, D), lambda i: (i, 0)),   # x: tiled over batch
            const(prep["w1"].shape), const(prep["b1"].shape),  # VMEM-resident
            const(prep["w2"].shape), const(prep["b2"].shape),
            const(prep["w3"].shape), const(prep["b3"].shape),
            const(prep["w4"].shape), const(prep["b4"].shape),
        ],
        out_specs=pl.BlockSpec((tile_b, _PAD_CLASSES), lambda i: (i, 0)),
        compiler_params=pltpu.CompilerParams(
            dimension_semantics=("parallel",)),
        cost_estimate=cost,
    )(x_in, prep["w1"], prep["b1"], prep["w2"], prep["b2"],
      prep["w3"], prep["b3"], prep["w4"], prep["b4"])

    return out[:B, :n_classes]


def init_params(key, input_dim, n_classes=3):
    """Deterministic init mimicking nn.Linear (uniform(-1/sqrt(fan_in), +))."""
    ks = jax.random.split(key, 8)

    def linear(kw, kb, fan_in, fan_out):
        bound = 1.0 / float(jnp.sqrt(fan_in))
        w = jax.random.uniform(kw, (fan_in, fan_out), jnp.float32, -bound, bound)
        b = jax.random.uniform(kb, (1, fan_out), jnp.float32, -bound, bound)
        return w, b

    w1, b1 = linear(ks[0], ks[1], input_dim, 512)
    w2, b2 = linear(ks[2], ks[3], 512, 256)
    w3, b3 = linear(ks[4], ks[5], 256, 128)
    w4, b4 = linear(ks[6], ks[7], 128, n_classes)
    return {"w1": w1, "b1": b1, "w2": w2, "b2": b2,
            "w3": w3, "b3": b3, "w4": w4, "b4": b4}


def _reference_forward(x, p):
    h = jnp.maximum(x @ p["w1"] + p["b1"], 0.0)
    h = jnp.maximum(h @ p["w2"] + p["b2"], 0.0)
    h = jnp.maximum(h @ p["w3"] + p["b3"], 0.0)
    return jax.nn.softmax(h @ p["w4"] + p["b4"], axis=-1)


if __name__ == "__main__":
    key = jax.random.PRNGKey(0)
    k_x, k_p = jax.random.split(key)

    batch, input_dim = 8, 32
    x = jax.random.normal(k_x, (batch, input_dim), jnp.float32)
    params = init_params(k_p, input_dim)
    prep = prepare_params(params)          # one-time weight prep (hoisted)

    out = classifier_forward(x, prep)
    out = jax.block_until_ready(out)

    ref = _reference_forward(x, params)
    assert out.shape == (batch, 3)
    assert bool(jnp.all(jnp.isfinite(out)))
    assert bool(jnp.allclose(jnp.sum(out, axis=-1), 1.0, atol=1e-4)), \
        "rows not normalized"
    # bf16 MXU operands vs f32 reference -> loose tolerance on probabilities.
    assert bool(jnp.allclose(out, ref, atol=2e-2, rtol=2e-2)), \
        "mismatch vs reference"

    print("KERNEL_OK")
</pallas_src>

<mosaic_0001>
module attributes {stable_mosaic.version = 11 : i64} {
  func.func @_classifier_kernel(%arg0: i32, %arg1: memref<8x32xf32, #tpu.memory_space<vmem>>, %arg2: memref<32x512xbf16, #tpu.memory_space<vmem>>, %arg3: memref<1x512xf32, #tpu.memory_space<vmem>>, %arg4: memref<512x256xbf16, #tpu.memory_space<vmem>>, %arg5: memref<1x256xf32, #tpu.memory_space<vmem>>, %arg6: memref<256x128xbf16, #tpu.memory_space<vmem>>, %arg7: memref<1x128xf32, #tpu.memory_space<vmem>>, %arg8: memref<128x8xbf16, #tpu.memory_space<vmem>>, %arg9: memref<1x8xf32, #tpu.memory_space<vmem>>, %arg10: memref<8x8xf32, #tpu.memory_space<vmem>>) attributes {dimension_semantics = [#tpu.dimension_semantics<parallel>], iteration_bounds = array<i64: 1>, scalar_prefetch = 0 : i64, scratch_operands = 0 : i64, tpu.core_type = #tpu.core_type<tc>, window_params = [{transform_indices = @transform_0, window_bounds = array<i64: 8, 32>}, {pipeline_mode = #tpu.pipeline_mode<synchronous>, transform_indices = @transform_1, window_bounds = array<i64: 32, 512>}, {pipeline_mode = #tpu.pipeline_mode<synchronous>, transform_indices = @transform_2, window_bounds = array<i64: 1, 512>}, {pipeline_mode = #tpu.pipeline_mode<synchronous>, transform_indices = @transform_3, window_bounds = array<i64: 512, 256>}, {pipeline_mode = #tpu.pipeline_mode<synchronous>, transform_indices = @transform_4, window_bounds = array<i64: 1, 256>}, {pipeline_mode = #tpu.pipeline_mode<synchronous>, transform_indices = @transform_5, window_bounds = array<i64: 256, 128>}, {pipeline_mode = #tpu.pipeline_mode<synchronous>, transform_indices = @transform_6, window_bounds = array<i64: 1, 128>}, {pipeline_mode = #tpu.pipeline_mode<synchronous>, transform_indices = @transform_7, window_bounds = array<i64: 128, 8>}, {pipeline_mode = #tpu.pipeline_mode<synchronous>, transform_indices = @transform_8, window_bounds = array<i64: 1, 8>}, {transform_indices = @transform_9, window_bounds = array<i64: 8, 8>}]} {
    %c0 = arith.constant 0 : index
    %c0_0 = arith.constant 0 : index
    %0 = vector.load %arg1[%c0, %c0_0] : memref<8x32xf32, #tpu.memory_space<vmem>>, vector<8x32xf32>
    %1 = arith.truncf %0 : vector<8x32xf32> to vector<8x32xbf16>
    %c0_1 = arith.constant 0 : index
    %c0_2 = arith.constant 0 : index
    %2 = vector.load %arg2[%c0_1, %c0_2] : memref<32x512xbf16, #tpu.memory_space<vmem>>, vector<32x512xbf16>
    %cst = arith.constant dense<0.000000e+00> : vector<8x512xf32>
    %3 = tpu.matmul %1, %2, %cst {dimension_numbers = #tpu.dot_dimension_numbers<[1], [0], [0], [1], [0, 0, 1, 1], [], []>} : vector<8x32xbf16>, vector<32x512xbf16>, vector<8x512xf32> -> vector<8x512xf32>
    %c0_3 = arith.constant 0 : index
    %c0_4 = arith.constant 0 : index
    %4 = vector.load %arg3[%c0_3, %c0_4] : memref<1x512xf32, #tpu.memory_space<vmem>>, vector<1x512xf32>
    %5 = vector.broadcast %4 : vector<1x512xf32> to vector<8x512xf32>
    %6 = arith.addf %3, %5 : vector<8x512xf32>
    %cst_5 = arith.constant 0.000000e+00 : f32
    %7 = vector.broadcast %cst_5 : f32 to vector<8x512xf32>
    %8 = arith.maximumf %6, %7 : vector<8x512xf32>
    %9 = arith.truncf %8 : vector<8x512xf32> to vector<8x512xbf16>
    %c0_6 = arith.constant 0 : index
    %c0_7 = arith.constant 0 : index
    %10 = vector.load %arg4[%c0_6, %c0_7] : memref<512x256xbf16, #tpu.memory_space<vmem>>, vector<512x256xbf16>
    %cst_8 = arith.constant dense<0.000000e+00> : vector<8x256xf32>
    %11 = tpu.matmul %9, %10, %cst_8 {dimension_numbers = #tpu.dot_dimension_numbers<[1], [0], [0], [1], [0, 0, 1, 1], [], []>} : vector<8x512xbf16>, vector<512x256xbf16>, vector<8x256xf32> -> vector<8x256xf32>
    %c0_9 = arith.constant 0 : index
    %c0_10 = arith.constant 0 : index
    %12 = vector.load %arg5[%c0_9, %c0_10] : memref<1x256xf32, #tpu.memory_space<vmem>>, vector<1x256xf32>
    %13 = vector.broadcast %12 : vector<1x256xf32> to vector<8x256xf32>
    %14 = arith.addf %11, %13 : vector<8x256xf32>
    %cst_11 = arith.constant 0.000000e+00 : f32
    %15 = vector.broadcast %cst_11 : f32 to vector<8x256xf32>
    %16 = arith.maximumf %14, %15 : vector<8x256xf32>
    %17 = arith.truncf %16 : vector<8x256xf32> to vector<8x256xbf16>
    %c0_12 = arith.constant 0 : index
    %c0_13 = arith.constant 0 : index
    %18 = vector.load %arg6[%c0_12, %c0_13] : memref<256x128xbf16, #tpu.memory_space<vmem>>, vector<256x128xbf16>
    %cst_14 = arith.constant dense<0.000000e+00> : vector<8x128xf32>
    %19 = tpu.matmul %17, %18, %cst_14 {dimension_numbers = #tpu.dot_dimension_numbers<[1], [0], [0], [1], [0, 0, 1, 1], [], []>} : vector<8x256xbf16>, vector<256x128xbf16>, vector<8x128xf32> -> vector<8x128xf32>
    %c0_15 = arith.constant 0 : index
    %c0_16 = arith.constant 0 : index
    %20 = vector.load %arg7[%c0_15, %c0_16] : memref<1x128xf32, #tpu.memory_space<vmem>>, vector<1x128xf32>
    %21 = vector.broadcast %20 : vector<1x128xf32> to vector<8x128xf32>
    %22 = arith.addf %19, %21 : vector<8x128xf32>
    %cst_17 = arith.constant 0.000000e+00 : f32
    %23 = vector.broadcast %cst_17 : f32 to vector<8x128xf32>
    %24 = arith.maximumf %22, %23 : vector<8x128xf32>
    %25 = arith.truncf %24 : vector<8x128xf32> to vector<8x128xbf16>
    %c0_18 = arith.constant 0 : index
    %c0_19 = arith.constant 0 : index
    %26 = vector.load %arg8[%c0_18, %c0_19] : memref<128x8xbf16, #tpu.memory_space<vmem>>, vector<128x8xbf16>
    %cst_20 = arith.constant dense<0.000000e+00> : vector<8x8xf32>
    %27 = tpu.matmul %25, %26, %cst_20 {dimension_numbers = #tpu.dot_dimension_numbers<[1], [0], [0], [1], [0, 0, 1, 1], [], []>} : vector<8x128xbf16>, vector<128x8xbf16>, vector<8x8xf32> -> vector<8x8xf32>
    %c0_21 = arith.constant 0 : index
    %c0_22 = arith.constant 0 : index
    %28 = vector.load %arg9[%c0_21, %c0_22] : memref<1x8xf32, #tpu.memory_space<vmem>>, vector<1x8xf32>
    %29 = vector.broadcast %28 : vector<1x8xf32> to vector<8x8xf32>
    %30 = arith.addf %27, %29 : vector<8x8xf32>
    %cst_23 = arith.constant dense<0xFF800000> : vector<8xf32>
    %31 = vector.multi_reduction <maximumf>, %30, %cst_23 [1] : vector<8x8xf32> to vector<8xf32>
    %32 = vector.shape_cast %31 : vector<8xf32> to vector<8x1xf32>
    %33 = vector.broadcast %32 : vector<8x1xf32> to vector<8x8xf32>
    %34 = arith.subf %30, %33 : vector<8x8xf32>
    %35 = math.exp %34 : vector<8x8xf32>
    %cst_24 = arith.constant dense<0.000000e+00> : vector<8xf32>
    %36 = vector.multi_reduction <add>, %35, %cst_24 [1] : vector<8x8xf32> to vector<8xf32>
    %37 = vector.shape_cast %36 : vector<8xf32> to vector<8x1xf32>
    %38 = vector.broadcast %37 : vector<8x1xf32> to vector<8x8xf32>
    %39 = arith.divf %35, %38 : vector<8x8xf32>
    %c0_25 = arith.constant 0 : index
    %c0_26 = arith.constant 0 : index
    %40 = vector.load %arg10[%c0_25, %c0_26] : memref<8x8xf32, #tpu.memory_space<vmem>>, vector<8x8xf32>
    tpu.vector_store %arg10[%c0_25, %c0_26], %39 {strides = array<i32>} : memref<8x8xf32, #tpu.memory_space<vmem>>, vector<8x8xf32>,
    return
  }
  func.func @transform_0(%arg0: i32) -> (i32, i32) {
    %c0_i32 = arith.constant 0 : i32
    %c0_i32_0 = arith.constant 0 : i32
    return %arg0, %c0_i32 : i32, i32
  }
  func.func @transform_1(%arg0: i32) -> (i32, i32) {
    %c0_i32 = arith.constant 0 : i32
    %c0_i32_0 = arith.constant 0 : i32
    %c0_i32_1 = arith.constant 0 : i32
    return %c0_i32, %c0_i32_0 : i32, i32
  }
  func.func @transform_2(%arg0: i32) -> (i32, i32) {
    %c0_i32 = arith.constant 0 : i32
    %c0_i32_0 = arith.constant 0 : i32
    %c0_i32_1 = arith.constant 0 : i32
    return %c0_i32, %c0_i32_0 : i32, i32
  }
  func.func @transform_3(%arg0: i32) -> (i32, i32) {
    %c0_i32 = arith.constant 0 : i32
    %c0_i32_0 = arith.constant 0 : i32
    %c0_i32_1 = arith.constant 0 : i32
    return %c0_i32, %c0_i32_0 : i32, i32
  }
  func.func @transform_4(%arg0: i32) -> (i32, i32) {
    %c0_i32 = arith.constant 0 : i32
    %c0_i32_0 = arith.constant 0 : i32
    %c0_i32_1 = arith.constant 0 : i32
    return %c0_i32, %c0_i32_0 : i32, i32
  }
  func.func @transform_5(%arg0: i32) -> (i32, i32) {
    %c0_i32 = arith.constant 0 : i32
    %c0_i32_0 = arith.constant 0 : i32
    %c0_i32_1 = arith.constant 0 : i32
    return %c0_i32, %c0_i32_0 : i32, i32
  }
  func.func @transform_6(%arg0: i32) -> (i32, i32) {
    %c0_i32 = arith.constant 0 : i32
    %c0_i32_0 = arith.constant 0 : i32
    %c0_i32_1 = arith.constant 0 : i32
    return %c0_i32, %c0_i32_0 : i32, i32
  }
  func.func @transform_7(%arg0: i32) -> (i32, i32) {
    %c0_i32 = arith.constant 0 : i32
    %c0_i32_0 = arith.constant 0 : i32
    %c0_i32_1 = arith.constant 0 : i32
    return %c0_i32, %c0_i32_0 : i32, i32
  }
  func.func @transform_8(%arg0: i32) -> (i32, i32) {
    %c0_i32 = arith.constant 0 : i32
    %c0_i32_0 = arith.constant 0 : i32
    %c0_i32_1 = arith.constant 0 : i32
    return %c0_i32, %c0_i32_0 : i32, i32
  }
  func.func @transform_9(%arg0: i32) -> (i32, i32) {
    %c0_i32 = arith.constant 0 : i32
    %c0_i32_0 = arith.constant 0 : i32
    return %arg0, %c0_i32 : i32, i32
  }
}

</mosaic_0001>

<llo_original>
// kernel: tpu_custom_call.1
$region0: #{tpu_custom_call.1}
  #allocation0 [shape = 'u32[]', space=smem, size = 0x4, offset = 0x4, fixed_abs, tag = 'smem constant byte address 0x4 - core index']
  #allocation1 [shape = 'u32[144,128]{1,0:T(1,128)}', space=vmem, size = 0x12000, scoped, tag = 'internal scratch']
  %s0 = inlined_call_operand.hbm [shape: f32[8,32], index: 0, kind: input, shape index: {}]
  %s1 = inlined_call_operand.vmem [shape: bf16[32,512], index: 1, kind: input, shape index: {}]
  %s2 = inlined_call_operand.vmem [shape: f32[1,512], index: 2, kind: input, shape index: {}]
  %s3 = inlined_call_operand.hbm [shape: bf16[512,256], index: 3, kind: input, shape index: {}]
  %s4 = inlined_call_operand.vmem [shape: f32[1,256], index: 4, kind: input, shape index: {}]
  %s5 = inlined_call_operand.hbm [shape: bf16[256,128], index: 5, kind: input, shape index: {}]
  %s6 = inlined_call_operand.vmem [shape: f32[1,128], index: 6, kind: input, shape index: {}]
  %s7 = inlined_call_operand.vmem [shape: bf16[128,8], index: 7, kind: input, shape index: {}]
  %s8 = inlined_call_operand.vmem [shape: f32[1,8], index: 8, kind: input, shape index: {}]
  %s9 = inlined_call_operand.hbm [shape: f32[8,8], index: 9, kind: output, shape index: {}]
  %s10 = sld [smem:[#allocation0]]
  $region58: #{tpu_custom_call.1} parent=0
    _
  %s12 = ssub.s32 1, %s10
  %s13 = scalar_select 0, %s12, %s10
  $region1: #{tpu_custom_call.1} parent=0
    #allocation2 [shape = 'u8[4096]{0}', space=vmem, size = 0x1000, scoped, tag = 'input window, operand 0, single buffered']
    #allocation3 [shape = 's32[1]{0}', space=sflag, size = 0x4, scoped, tag = 'scoped memory for tpu_custom_call.1']
    #allocation4 [shape = 's32[1]{0}', space=sflag, size = 0x4, scoped, tag = 'scoped memory for tpu_custom_call.1']
    #allocation5 [shape = 'u8[262144]{0}', space=vmem, size = 0x40000, scoped, tag = 'input window, operand 3, single buffered']
    #allocation6 [shape = 's32[1]{0}', space=sflag, size = 0x4, scoped, tag = 'scoped memory for tpu_custom_call.1']
    #allocation7 [shape = 'u8[65536]{0}', space=vmem, size = 0x10000, scoped, tag = 'input window, operand 5, single buffered']
    #allocation8 [shape = 'u8[4096]{0}', space=vmem, size = 0x1000, scoped, tag = 'output window, operand 0, single buffered']
    %14 = vsyncpa [#allocation3], 0
    %15 = vsyncpa [#allocation6], 0
    %16 = vsyncpa [#allocation4], 0
    // Predicated region
    $region2: #{tpu_custom_call.1} parent=1 // pred_check
      _
    $region3: #{tpu_custom_call.1} parent=1 // pred_check_branch
      %18 = sbr.rel (0) target = $region5
    $region4: #{tpu_custom_call.1} parent=1 // pred_region
      %s20 = ssub.s32 128, 128
      %21 = vsyncadd [#allocation3], %s20
      %s23 = sshll.u32 [#allocation2], 4
      %s24 = int_to_ptr.vmem [resolvable:$true] %s23
      %26 = dma.hbm_to_vmem [thread:$0]  %s0, 128, %s24, [#allocation3]
    $region5: #{tpu_custom_call.1} parent=1 // pred_fallthru
      _
    // Predicated region
    $region6: #{tpu_custom_call.1} parent=1 // pred_check
      _
    $region7: #{tpu_custom_call.1} parent=1 // pred_check_branch
      %28 = sbr.rel (0) target = $region9
    $region8: #{tpu_custom_call.1} parent=1 // pred_region
      _
    $region9: #{tpu_custom_call.1} parent=1 // pred_fallthru
      _
    // Predicated region
    $region10: #{tpu_custom_call.1} parent=1 // pred_check
      _
    $region11: #{tpu_custom_call.1} parent=1 // pred_check_branch
      %30 = sbr.rel (0) target = $region13
    $region12: #{tpu_custom_call.1} parent=1 // pred_region
      _
    $region13: #{tpu_custom_call.1} parent=1 // pred_fallthru
      _
    // Predicated region
    $region14: #{tpu_custom_call.1} parent=1 // pred_check
      _
    $region15: #{tpu_custom_call.1} parent=1 // pred_check_branch
      %32 = sbr.rel (0) target = $region17
    $region16: #{tpu_custom_call.1} parent=1 // pred_region
      %s34 = ssub.s32 8192, 8192
      %35 = vsyncadd [#allocation6], %s34
      %s36 = sshll.u32 [#allocation5], 4
      %s37 = int_to_ptr.vmem [resolvable:$true] %s36
      %42 = dma.hbm_to_vmem [thread:$0]  %s3, 8192, %s37, [#allocation6], 128, 128, 8
    $region17: #{tpu_custom_call.1} parent=1 // pred_fallthru
      _
    // Predicated region
    $region18: #{tpu_custom_call.1} parent=1 // pred_check
      _
    $region19: #{tpu_custom_call.1} parent=1 // pred_check_branch
      %44 = sbr.rel (0) target = $region21
    $region20: #{tpu_custom_call.1} parent=1 // pred_region
      _
    $region21: #{tpu_custom_call.1} parent=1 // pred_fallthru
      _
    // Predicated region
    $region22: #{tpu_custom_call.1} parent=1 // pred_check
      _
    $region23: #{tpu_custom_call.1} parent=1 // pred_check_branch
      %46 = sbr.rel (0) target = $region25
    $region24: #{tpu_custom_call.1} parent=1 // pred_region
      %s48 = ssub.s32 2048, 2048
      %49 = vsyncadd [#allocation6], %s48
      %s50 = sshll.u32 [#allocation7], 4
      %s51 = int_to_ptr.vmem [resolvable:$true] %s50
      %56 = dma.hbm_to_vmem [thread:$0]  %s5, 2048, %s51, [#allocation6], 64, 64, 4
    $region25: #{tpu_custom_call.1} parent=1 // pred_fallthru
      _
    // Predicated region
    $region26: #{tpu_custom_call.1} parent=1 // pred_check
      _
    $region27: #{tpu_custom_call.1} parent=1 // pred_check_branch
      %58 = sbr.rel (0) target = $region29
    $region28: #{tpu_custom_call.1} parent=1 // pred_region
      _
    $region29: #{tpu_custom_call.1} parent=1 // pred_fallthru
      _
    // Predicated region
    $region30: #{tpu_custom_call.1} parent=1 // pred_check
      _
    $region31: #{tpu_custom_call.1} parent=1 // pred_check_branch
      %60 = sbr.rel (0) target = $region33
    $region32: #{tpu_custom_call.1} parent=1 // pred_region
      _
    $region33: #{tpu_custom_call.1} parent=1 // pred_fallthru
      _
    // Predicated region
    $region34: #{tpu_custom_call.1} parent=1 // pred_check
      _
    $region35: #{tpu_custom_call.1} parent=1 // pred_check_branch
      %62 = sbr.rel (0) target = $region37
    $region36: #{tpu_custom_call.1} parent=1 // pred_region
      _
    $region37: #{tpu_custom_call.1} parent=1 // pred_fallthru
      _
    // Predicated region
    $region38: #{tpu_custom_call.1} parent=1 // pred_check
      _
    $region39: #{tpu_custom_call.1} parent=1 // pred_check_branch
      %64 = sbr.rel (0) target = $region41
    $region40: #{tpu_custom_call.1} parent=1 // pred_region
      %65 = dma.done [#allocation3], 128
    $region41: #{tpu_custom_call.1} parent=1 // pred_fallthru
      _
    // Predicated region
    $region42: #{tpu_custom_call.1} parent=1 // pred_check
      _
    $region43: #{tpu_custom_call.1} parent=1 // pred_check_branch
      %67 = sbr.rel (0) target = $region45
    $region44: #{tpu_custom_call.1} parent=1 // pred_region
      %68 = dma.done [#allocation6], 8192
    $region45: #{tpu_custom_call.1} parent=1 // pred_fallthru
      _
    // Predicated region
    $region46: #{tpu_custom_call.1} parent=1 // pred_check
      _
    $region47: #{tpu_custom_call.1} parent=1 // pred_check_branch
      %70 = sbr.rel (0) target = $region49
    $region48: #{tpu_custom_call.1} parent=1 // pred_region
      %71 = dma.done [#allocation6], 2048
    $region49: #{tpu_custom_call.1} parent=1 // pred_fallthru
      _
    %v73 = vld [vmem:[#allocation2] sm:$0xff]
    %v74 = vpack.c.bf16 %v73, %v73
    %v75 = vld [vmem:[%s1] sm:$0xff]
    %v76 = vld [vmem:[%s1 + $0x8] sm:$0xff]
    %v77 = vld [vmem:[%s1 + $0x10] sm:$0xff]
    %v78 = vld [vmem:[%s1 + $0x18] sm:$0xff]
    %v79 = vld [vmem:[%s1 + $0x20] sm:$0xff]
    %v80 = vld [vmem:[%s1 + $0x28] sm:$0xff]
    %v81 = vld [vmem:[%s1 + $0x30] sm:$0xff]
    %v82 = vld [vmem:[%s1 + $0x38] sm:$0xff]
    %v83 = vld [vmem:[%s2] sm:$0xf]
    %v85 = vlaneseq
    %v86 = vshrl.u32 %v85, 7
    %v87 = vsub.s32 0, %v86
    %v88 = vrot.slane %v83, %v87
    %v89 = vlaneseq
    %v90 = vshrl.u32 %v89, 7
    %v91 = vsub.s32 1, %v90
    %v92 = vrot.slane %v83, %v91
    %v93 = vlaneseq
    %v94 = vshrl.u32 %v93, 7
    %v95 = vsub.s32 2, %v94
    %v96 = vrot.slane %v83, %v95
    %v97 = vlaneseq
    %v98 = vshrl.u32 %v97, 7
    %v99 = vsub.s32 3, %v98
    %v100 = vrot.slane %v83, %v99
    %v113 = vunpack.c.l.b16 %v75
    %v114 = vunpack.c.h.b16 %v75
    %v115 = vunpack.c.l.b16 %v76
    %v116 = vunpack.c.h.b16 %v76
    %v117 = vunpack.c.l.b16 %v77
    %v118 = vunpack.c.h.b16 %v77
    %v119 = vunpack.c.l.b16 %v78
    %v120 = vunpack.c.h.b16 %v78
    %v121 = vunpack.c.l.b16 %v79
    %v122 = vunpack.c.h.b16 %v79
    %v123 = vunpack.c.l.b16 %v80
    %v124 = vunpack.c.h.b16 %v80
    %v125 = vunpack.c.l.b16 %v81
    %v126 = vunpack.c.h.b16 %v81
    %v127 = vunpack.c.l.b16 %v82
    %v128 = vunpack.c.h.b16 %v82
    %v129 = vpack.c.b16 %v117, %v113
    %v130 = vpack.c.b16 %v118, %v114
    %v131 = vpack.c.b16 %v119, %v115
    %v132 = vpack.c.b16 %v120, %v116
    %v133 = vpack.c.b16 %v125, %v121
    %v134 = vpack.c.b16 %v126, %v122
    %v135 = vpack.c.b16 %v127, %v123
    %v136 = vpack.c.b16 %v128, %v124
    %vm145 = vcmask 261120
    %v147 = vsel %vm145, %v74, 0
    %149 = vmatprep.subr.bf16.mxu0 %v130
    %150 = vmatpush1.bf16.msra.mxu0 %v129
    %151 = vmatprep.subr.bf16.mxu0 %v134
    %152 = vmatpush1.bf16.msra.mxu0 %v133
    %153 = vmatprep.subr.bf16.mxu0 0
    %154 = vmatpush1.bf16.msra.mxu0 0
    %155 = vmatprep.subr.bf16.mxu0 0
    %156 = vmatpush1.bf16.msra.mxu0 0
    %157 = vmatprep.subr.bf16.mxu0 0
    %158 = vmatpush1.bf16.msra.mxu0 0
    %159 = vmatprep.subr.bf16.mxu0 0
    %160 = vmatpush1.bf16.msra.mxu0 0
    %161 = vmatprep.subr.bf16.mxu0 0
    %162 = vmatpush1.bf16.msra.mxu0 0
    %163 = vmatprep.subr.bf16.mxu0 0
    %164 = vmatpush1.bf16.msra.mxu0 0
    %165 = vmatprep.subr.bf16.mxu0 0
    %166 = vmatpush1.bf16.msra.mxu0 0
    %167 = vmatprep.subr.bf16.mxu0 0
    %168 = vmatpush1.bf16.msra.mxu0 0
    %169 = vmatprep.subr.bf16.mxu0 0
    %170 = vmatpush1.bf16.msra.mxu0 0
    %171 = vmatprep.subr.bf16.mxu0 0
    %172 = vmatpush1.bf16.msra.mxu0 0
    %173 = vmatprep.subr.bf16.mxu0 0
    %174 = vmatpush1.bf16.msra.mxu0 0
    %175 = vmatprep.subr.bf16.mxu0 0
    %176 = vmatpush1.bf16.msra.mxu0 0
    %177 = vmatprep.subr.bf16.mxu0 0
    %178 = vmatpush1.bf16.msra.mxu0 0
    %179 = vmatprep.subr.bf16.mxu0 0
    %180 = vmatpush1.bf16.msra.mxu0 0
    %181 = vmatprep.mubr.bf16.mxu0 0
    %182 = vmatmul.mubr.bf16.gmra.mrb[0].mxu0 %v147
    %v183 = vpop.f32.mrb[0].mxu0
    %v184 = vadd.f32 %v88, %v183
    %v185 = vpop.f32.mrb[0].mxu0
    %v186 = vadd.f32 %v92, %v185
    %v187 = vpop.f32.mrb[0].mxu0
    %v188 = vpop.f32.mrb[0].mxu0
    %189 = vdwg.mxu0
    %190 = vmatprep.subr.bf16.mxu0 %v132
    %191 = vmatpush1.bf16.msra.mxu0 %v131
    %192 = vmatprep.subr.bf16.mxu0 %v136
    %193 = vmatpush1.bf16.msra.mxu0 %v135
    %194 = vmatprep.subr.bf16.mxu0 0
    %195 = vmatpush1.bf16.msra.mxu0 0
    %196 = vmatprep.subr.bf16.mxu0 0
    %197 = vmatpush1.bf16.msra.mxu0 0
    %198 = vmatprep.subr.bf16.mxu0 0
    %199 = vmatpush1.bf16.msra.mxu0 0
    %200 = vmatprep.subr.bf16.mxu0 0
    %201 = vmatpush1.bf16.msra.mxu0 0
    %202 = vmatprep.subr.bf16.mxu0 0
    %203 = vmatpush1.bf16.msra.mxu0 0
    %204 = vmatprep.subr.bf16.mxu0 0
    %205 = vmatpush1.bf16.msra.mxu0 0
    %206 = vmatprep.subr.bf16.mxu0 0
    %207 = vmatpush1.bf16.msra.mxu0 0
    %208 = vmatprep.subr.bf16.mxu0 0
    %209 = vmatpush1.bf16.msra.mxu0 0
    %210 = vmatprep.subr.bf16.mxu0 0
    %211 = vmatpush1.bf16.msra.mxu0 0
    %212 = vmatprep.subr.bf16.mxu0 0
    %213 = vmatpush1.bf16.msra.mxu0 0
    %214 = vmatprep.subr.bf16.mxu0 0
    %215 = vmatpush1.bf16.msra.mxu0 0
    %216 = vmatprep.subr.bf16.mxu0 0
    %217 = vmatpush1.bf16.msra.mxu0 0
    %218 = vmatprep.subr.bf16.mxu0 0
    %219 = vmatpush1.bf16.msra.mxu0 0
    %220 = vmatprep.subr.bf16.mxu0 0
    %221 = vmatpush1.bf16.msra.mxu0 0
    %222 = vmatprep.mubr.bf16.mxu0 0
    %223 = vmatmul.mubr.bf16.gmra.mrb[0].mxu0 %v147
    %v224 = vpop.f32.mrb[0].mxu0
    %v225 = vadd.f32 %v96, %v224
    %v226 = vpop.f32.mrb[0].mxu0
    %v227 = vadd.f32 %v100, %v226
    %v228 = vpop.f32.mrb[0].mxu0
    %v229 = vpop.f32.mrb[0].mxu0
    %230 = vdwg.mxu0
    %v231 = vmax.f32 %v184, 0.0
    %v232 = vmax.f32 %v186, 0.0
    %v233 = vmax.f32 %v225, 0.0
    %v234 = vmax.f32 %v227, 0.0
    %v235 = vpack.c.bf16 %v231, %v231
    %v236 = vpack.c.bf16 %v232, %v232
    %v237 = vpack.c.bf16 %v233, %v233
    %v238 = vpack.c.bf16 %v234, %v234
    %v239 = vld [vmem:[#allocation5] sm:$0xff]
    %v240 = vld [vmem:[#allocation5 + $0x8] sm:$0xff]
    %v241 = vld [vmem:[#allocation5 + $0x10] sm:$0xff]
    %v242 = vld [vmem:[#allocation5 + $0x18] sm:$0xff]
    %v243 = vld [vmem:[#allocation5 + $0x20] sm:$0xff]
    %v244 = vld [vmem:[#allocation5 + $0x28] sm:$0xff]
    %v245 = vld [vmem:[#allocation5 + $0x30] sm:$0xff]
    %v246 = vld [vmem:[#allocation5 + $0x38] sm:$0xff]
    %v247 = vld [vmem:[#allocation5 + $0x40] sm:$0xff]
    %v248 = vld [vmem:[#allocation5 + $0x48] sm:$0xff]
    %v249 = vld [vmem:[#allocation5 + $0x50] sm:$0xff]
    %v250 = vld [vmem:[#allocation5 + $0x58] sm:$0xff]
    %v251 = vld [vmem:[#allocation5 + $0x60] sm:$0xff]
    %v252 = vld [vmem:[#allocation5 + $0x68] sm:$0xff]
    %v253 = vld [vmem:[#allocation5 + $0x70] sm:$0xff]
    %v254 = vld [vmem:[#allocation5 + $0x78] sm:$0xff]
    %v255 = vld [vmem:[#allocation5 + $0x80] sm:$0xff]
    %v256 = vld [vmem:[#allocation5 + $0x88] sm:$0xff]
    %v257 = vld [vmem:[#allocation5 + $0x90] sm:$0xff]
    %v258 = vld [vmem:[#allocation5 + $0x98] sm:$0xff]
    %v259 = vld [vmem:[#allocation5 + $0xa0] sm:$0xff]
    %v260 = vld [vmem:[#allocation5 + $0xa8] sm:$0xff]
    %v261 = vld [vmem:[#allocation5 + $0xb0] sm:$0xff]
    %v262 = vld [vmem:[#allocation5 + $0xb8] sm:$0xff]
    %v263 = vld [vmem:[#allocation5 + $0xc0] sm:$0xff]
    %v264 = vld [vmem:[#allocation5 + $0xc8] sm:$0xff]
    %v265 = vld [vmem:[#allocation5 + $0xd0] sm:$0xff]
    %v266 = vld [vmem:[#allocation5 + $0xd8] sm:$0xff]
    %v267 = vld [vmem:[#allocation5 + $0xe0] sm:$0xff]
    %v268 = vld [vmem:[#allocation5 + $0xe8] sm:$0xff]
    %v269 = vld [vmem:[#allocation5 + $0xf0] sm:$0xff]
    %v270 = vld [vmem:[#allocation5 + $0xf8] sm:$0xff]
    %v271 = vld [vmem:[#allocation5 + $0x100] sm:$0xff]
    %v272 = vld [vmem:[#allocation5 + $0x108] sm:$0xff]
    %v273 = vld [vmem:[#allocation5 + $0x110] sm:$0xff]
    %v274 = vld [vmem:[#allocation5 + $0x118] sm:$0xff]
    %v275 = vld [vmem:[#allocation5 + $0x120] sm:$0xff]
    %v276 = vld [vmem:[#allocation5 + $0x128] sm:$0xff]
    %v277 = vld [vmem:[#allocation5 + $0x130] sm:$0xff]
    %v278 = vld [vmem:[#allocation5 + $0x138] sm:$0xff]
    %v279 = vld [vmem:[#allocation5 + $0x140] sm:$0xff]
    %v280 = vld [vmem:[#allocation5 + $0x148] sm:$0xff]
    %v281 = vld [vmem:[#allocation5 + $0x150] sm:$0xff]
    %v282 = vld [vmem:[#allocation5 + $0x158] sm:$0xff]
    %v283 = vld [vmem:[#allocation5 + $0x160] sm:$0xff]
    %v284 = vld [vmem:[#allocation5 + $0x168] sm:$0xff]
    %v285 = vld [vmem:[#allocation5 + $0x170] sm:$0xff]
    %v286 = vld [vmem:[#allocation5 + $0x178] sm:$0xff]
    %v287 = vld [vmem:[#allocation5 + $0x180] sm:$0xff]
    %v288 = vld [vmem:[#allocation5 + $0x188] sm:$0xff]
    %v289 = vld [vmem:[#allocation5 + $0x190] sm:$0xff]
    %v290 = vld [vmem:[#allocation5 + $0x198] sm:$0xff]
    %v291 = vld [vmem:[#allocation5 + $0x1a0] sm:$0xff]
    %v292 = vld [vmem:[#allocation5 + $0x1a8] sm:$0xff]
    %v293 = vld [vmem:[#allocation5 + $0x1b0] sm:$0xff]
    %v294 = vld [vmem:[#allocation5 + $0x1b8] sm:$0xff]
    %v295 = vld [vmem:[#allocation5 + $0x1c0] sm:$0xff]
    %v296 = vld [vmem:[#allocation5 + $0x1c8] sm:$0xff]
    %v297 = vld [vmem:[#allocation5 + $0x1d0] sm:$0xff]
    %v298 = vld [vmem:[#allocation5 + $0x1d8] sm:$0xff]
    %v299 = vld [vmem:[#allocation5 + $0x1e0] sm:$0xff]
    %v300 = vld [vmem:[#allocation5 + $0x1e8] sm:$0xff]
    %v301 = vld [vmem:[#allocation5 + $0x1f0] sm:$0xff]
    %v302 = vld [vmem:[#allocation5 + $0x1f8] sm:$0xff]
    %v303 = vld [vmem:[%s4] sm:$0x3]
    %v305 = vlaneseq
    %v306 = vshrl.u32 %v305, 7
    %v307 = vsub.s32 0, %v306
    %v308 = vrot.slane %v303, %v307
    %v309 = vlaneseq
    %v310 = vshrl.u32 %v309, 7
    %v311 = vsub.s32 1, %v310
    %v312 = vrot.slane %v303, %v311
    %v379 = vunpack.c.l.b16 %v239
    %v380 = vunpack.c.h.b16 %v239
    %v381 = vunpack.c.l.b16 %v240
    %v382 = vunpack.c.h.b16 %v240
    %v383 = vunpack.c.l.b16 %v241
    %v384 = vunpack.c.h.b16 %v241
    %v385 = vunpack.c.l.b16 %v242
    %v386 = vunpack.c.h.b16 %v242
    %v387 = vunpack.c.l.b16 %v243
    %v388 = vunpack.c.h.b16 %v243
    %v389 = vunpack.c.l.b16 %v244
    %v390 = vunpack.c.h.b16 %v244
    %v391 = vunpack.c.l.b16 %v245
    %v392 = vunpack.c.h.b16 %v245
    %v393 = vunpack.c.l.b16 %v246
    %v394 = vunpack.c.h.b16 %v246
    %v395 = vunpack.c.l.b16 %v247
    %v396 = vunpack.c.h.b16 %v247
    %v397 = vunpack.c.l.b16 %v248
    %v398 = vunpack.c.h.b16 %v248
    %v399 = vunpack.c.l.b16 %v249
    %v400 = vunpack.c.h.b16 %v249
    %v401 = vunpack.c.l.b16 %v250
    %v402 = vunpack.c.h.b16 %v250
    %v403 = vunpack.c.l.b16 %v251
    %v404 = vunpack.c.h.b16 %v251
    %v405 = vunpack.c.l.b16 %v252
    %v406 = vunpack.c.h.b16 %v252
    %v407 = vunpack.c.l.b16 %v253
    %v408 = vunpack.c.h.b16 %v253
    %v409 = vunpack.c.l.b16 %v254
    %v410 = vunpack.c.h.b16 %v254
    %v411 = vunpack.c.l.b16 %v255
    %v412 = vunpack.c.h.b16 %v255
    %v413 = vunpack.c.l.b16 %v256
    %v414 = vunpack.c.h.b16 %v256
    %v415 = vunpack.c.l.b16 %v257
    %v416 = vunpack.c.h.b16 %v257
    %v417 = vunpack.c.l.b16 %v258
    %v418 = vunpack.c.h.b16 %v258
    %v419 = vunpack.c.l.b16 %v259
    %v420 = vunpack.c.h.b16 %v259
    %v421 = vunpack.c.l.b16 %v260
    %v422 = vunpack.c.h.b16 %v260
    %v423 = vunpack.c.l.b16 %v261
    %v424 = vunpack.c.h.b16 %v261
    %v425 = vunpack.c.l.b16 %v262
    %v426 = vunpack.c.h.b16 %v262
    %v427 = vunpack.c.l.b16 %v263
    %v428 = vunpack.c.h.b16 %v263
    %v429 = vunpack.c.l.b16 %v264
    %v430 = vunpack.c.h.b16 %v264
    %v431 = vunpack.c.l.b16 %v265
    %v432 = vunpack.c.h.b16 %v265
    %v433 = vunpack.c.l.b16 %v266
    %v434 = vunpack.c.h.b16 %v266
    %v435 = vunpack.c.l.b16 %v267
    %v436 = vunpack.c.h.b16 %v267
    %v437 = vunpack.c.l.b16 %v268
    %v438 = vunpack.c.h.b16 %v268
    %v439 = vunpack.c.l.b16 %v269
    %v440 = vunpack.c.h.b16 %v269
    %v441 = vunpack.c.l.b16 %v270
    %v442 = vunpack.c.h.b16 %v270
    %v443 = vunpack.c.l.b16 %v271
    %v444 = vunpack.c.h.b16 %v271
    %v445 = vunpack.c.l.b16 %v272
    %v446 = vunpack.c.h.b16 %v272
    %v447 = vunpack.c.l.b16 %v273
    %v448 = vunpack.c.h.b16 %v273
    %v449 = vunpack.c.l.b16 %v274
    %v450 = vunpack.c.h.b16 %v274
    %v451 = vunpack.c.l.b16 %v275
    %v452 = vunpack.c.h.b16 %v275
    %v453 = vunpack.c.l.b16 %v276
    %v454 = vunpack.c.h.b16 %v276
    %v455 = vunpack.c.l.b16 %v277
    %v456 = vunpack.c.h.b16 %v277
    %v457 = vunpack.c.l.b16 %v278
    %v458 = vunpack.c.h.b16 %v278
    %v459 = vunpack.c.l.b16 %v279
    %v460 = vunpack.c.h.b16 %v279
    %v461 = vunpack.c.l.b16 %v280
    %v462 = vunpack.c.h.b16 %v280
    %v463 = vunpack.c.l.b16 %v281
    %v464 = vunpack.c.h.b16 %v281
    %v465 = vunpack.c.l.b16 %v282
    %v466 = vunpack.c.h.b16 %v282
    %v467 = vunpack.c.l.b16 %v283
    %v468 = vunpack.c.h.b16 %v283
    %v469 = vunpack.c.l.b16 %v284
    %v470 = vunpack.c.h.b16 %v284
    %v471 = vunpack.c.l.b16 %v285
    %v472 = vunpack.c.h.b16 %v285
    %v473 = vunpack.c.l.b16 %v286
    %v474 = vunpack.c.h.b16 %v286
    %v475 = vunpack.c.l.b16 %v287
    %v476 = vunpack.c.h.b16 %v287
    %v477 = vunpack.c.l.b16 %v288
    %v478 = vunpack.c.h.b16 %v288
    %v479 = vunpack.c.l.b16 %v289
    %v480 = vunpack.c.h.b16 %v289
    %v481 = vunpack.c.l.b16 %v290
    %v482 = vunpack.c.h.b16 %v290
    %v483 = vunpack.c.l.b16 %v291
    %v484 = vunpack.c.h.b16 %v291
    %v485 = vunpack.c.l.b16 %v292
    %v486 = vunpack.c.h.b16 %v292
    %v487 = vunpack.c.l.b16 %v293
    %v488 = vunpack.c.h.b16 %v293
    %v489 = vunpack.c.l.b16 %v294
    %v490 = vunpack.c.h.b16 %v294
    %v491 = vunpack.c.l.b16 %v295
    %v492 = vunpack.c.h.b16 %v295
    %v493 = vunpack.c.l.b16 %v296
    %v494 = vunpack.c.h.b16 %v296
    %v495 = vunpack.c.l.b16 %v297
    %v496 = vunpack.c.h.b16 %v297
    %v497 = vunpack.c.l.b16 %v298
    %v498 = vunpack.c.h.b16 %v298
    %v499 = vunpack.c.l.b16 %v299
    %v500 = vunpack.c.h.b16 %v299
    %v501 = vunpack.c.l.b16 %v300
    %v502 = vunpack.c.h.b16 %v300
    %v503 = vunpack.c.l.b16 %v301
    %v504 = vunpack.c.h.b16 %v301
    %v505 = vunpack.c.l.b16 %v302
    %v506 = vunpack.c.h.b16 %v302
    %v507 = vpack.c.b16 %v381, %v379
    %v508 = vpack.c.b16 %v382, %v380
    %v509 = vpack.c.b16 %v385, %v383
    %v510 = vpack.c.b16 %v386, %v384
    %v511 = vpack.c.b16 %v389, %v387
    %v512 = vpack.c.b16 %v390, %v388
    %v513 = vpack.c.b16 %v393, %v391
    %v514 = vpack.c.b16 %v394, %v392
    %v515 = vpack.c.b16 %v397, %v395
    %v516 = vpack.c.b16 %v398, %v396
    %v517 = vpack.c.b16 %v401, %v399
    %v518 = vpack.c.b16 %v402, %v400
    %v519 = vpack.c.b16 %v405, %v403
    %v520 = vpack.c.b16 %v406, %v404
    %v521 = vpack.c.b16 %v409, %v407
    %v522 = vpack.c.b16 %v410, %v408
    %v523 = vpack.c.b16 %v413, %v411
    %v524 = vpack.c.b16 %v414, %v412
    %v525 = vpack.c.b16 %v417, %v415
    %v526 = vpack.c.b16 %v418, %v416
    %v527 = vpack.c.b16 %v421, %v419
    %v528 = vpack.c.b16 %v422, %v420
    %v529 = vpack.c.b16 %v425, %v423
    %v530 = vpack.c.b16 %v426, %v424
    %v531 = vpack.c.b16 %v429, %v427
    %v532 = vpack.c.b16 %v430, %v428
    %v533 = vpack.c.b16 %v433, %v431
    %v534 = vpack.c.b16 %v434, %v432
    %v535 = vpack.c.b16 %v437, %v435
    %v536 = vpack.c.b16 %v438, %v436
    %v537 = vpack.c.b16 %v441, %v439
    %v538 = vpack.c.b16 %v442, %v440
    %v539 = vpack.c.b16 %v445, %v443
    %v540 = vpack.c.b16 %v446, %v444
    %v541 = vpack.c.b16 %v449, %v447
    %v542 = vpack.c.b16 %v450, %v448
    %v543 = vpack.c.b16 %v453, %v451
    %v544 = vpack.c.b16 %v454, %v452
    %v545 = vpack.c.b16 %v457, %v455
    %v546 = vpack.c.b16 %v458, %v456
    %v547 = vpack.c.b16 %v461, %v459
    %v548 = vpack.c.b16 %v462, %v460
    %v549 = vpack.c.b16 %v465, %v463
    %v550 = vpack.c.b16 %v466, %v464
    %v551 = vpack.c.b16 %v469, %v467
    %v552 = vpack.c.b16 %v470, %v468
    %v553 = vpack.c.b16 %v473, %v471
    %v554 = vpack.c.b16 %v474, %v472
    %v555 = vpack.c.b16 %v477, %v475
    %v556 = vpack.c.b16 %v478, %v476
    %v557 = vpack.c.b16 %v481, %v479
    %v558 = vpack.c.b16 %v482, %v480
    %v559 = vpack.c.b16 %v485, %v483
    %v560 = vpack.c.b16 %v486, %v484
    %v561 = vpack.c.b16 %v489, %v487
    %v562 = vpack.c.b16 %v490, %v488
    %v563 = vpack.c.b16 %v493, %v491
    %v564 = vpack.c.b16 %v494, %v492
    %v565 = vpack.c.b16 %v497, %v495
    %v566 = vpack.c.b16 %v498, %v496
    %v567 = vpack.c.b16 %v501, %v499
    %v568 = vpack.c.b16 %v502, %v500
    %v569 = vpack.c.b16 %v505, %v503
    %v570 = vpack.c.b16 %v506, %v504
    %635 = vmatprep.subr.bf16.mxu0 %v508
    %636 = vmatpush1.bf16.msra.mxu0 %v507
    %637 = vmatprep.subr.bf16.mxu0 %v510
    %638 = vmatpush1.bf16.msra.mxu0 %v509
    %639 = vmatprep.subr.bf16.mxu0 %v512
    %640 = vmatpush1.bf16.msra.mxu0 %v511
    %641 = vmatprep.subr.bf16.mxu0 %v514
    %642 = vmatpush1.bf16.msra.mxu0 %v513
    %643 = vmatprep.subr.bf16.mxu0 %v516
    %644 = vmatpush1.bf16.msra.mxu0 %v515
    %645 = vmatprep.subr.bf16.mxu0 %v518
    %646 = vmatpush1.bf16.msra.mxu0 %v517
    %647 = vmatprep.subr.bf16.mxu0 %v520
    %648 = vmatpush1.bf16.msra.mxu0 %v519
    %649 = vmatprep.subr.bf16.mxu0 %v522
    %650 = vmatpush1.bf16.msra.mxu0 %v521
    %651 = vmatprep.subr.bf16.mxu0 %v524
    %652 = vmatpush1.bf16.msra.mxu0 %v523
    %653 = vmatprep.subr.bf16.mxu0 %v526
    %654 = vmatpush1.bf16.msra.mxu0 %v525
    %655 = vmatprep.subr.bf16.mxu0 %v528
    %656 = vmatpush1.bf16.msra.mxu0 %v527
    %657 = vmatprep.subr.bf16.mxu0 %v530
    %658 = vmatpush1.bf16.msra.mxu0 %v529
    %659 = vmatprep.subr.bf16.mxu0 %v532
    %660 = vmatpush1.bf16.msra.mxu0 %v531
    %661 = vmatprep.subr.bf16.mxu0 %v534
    %662 = vmatpush1.bf16.msra.mxu0 %v533
    %663 = vmatprep.subr.bf16.mxu0 %v536
    %664 = vmatpush1.bf16.msra.mxu0 %v535
    %665 = vmatprep.subr.bf16.mxu0 %v538
    %666 = vmatpush1.bf16.msra.mxu0 %v537
    %667 = vmatprep.mubr.bf16.mxu0 %v236
    %668 = vmatmul.mubr.bf16.gmra.mrb[0].mxu0 %v235
    %v669 = vpop.f32.mrb[0].mxu0
    %v670 = vadd.f32 %v308, %v669
    %v671 = vpop.f32.mrb[0].mxu0
    %v672 = vadd.f32 %v312, %v671
    %v673 = vpop.f32.mrb[0].mxu0
    %v674 = vpop.f32.mrb[0].mxu0
    %675 = vdwg.mxu0
    %676 = vmatprep.subr.bf16.mxu0 %v540
    %677 = vmatpush1.bf16.msra.mxu0 %v539
    %678 = vmatprep.subr.bf16.mxu0 %v542
    %679 = vmatpush1.bf16.msra.mxu0 %v541
    %680 = vmatprep.subr.bf16.mxu0 %v544
    %681 = vmatpush1.bf16.msra.mxu0 %v543
    %682 = vmatprep.subr.bf16.mxu0 %v546
    %683 = vmatpush1.bf16.msra.mxu0 %v545
    %684 = vmatprep.subr.bf16.mxu0 %v548
    %685 = vmatpush1.bf16.msra.mxu0 %v547
    %686 = vmatprep.subr.bf16.mxu0 %v550
    %687 = vmatpush1.bf16.msra.mxu0 %v549
    %688 = vmatprep.subr.bf16.mxu0 %v552
    %689 = vmatpush1.bf16.msra.mxu0 %v551
    %690 = vmatprep.subr.bf16.mxu0 %v554
    %691 = vmatpush1.bf16.msra.mxu0 %v553
    %692 = vmatprep.subr.bf16.mxu0 %v556
    %693 = vmatpush1.bf16.msra.mxu0 %v555
    %694 = vmatprep.subr.bf16.mxu0 %v558
    %695 = vmatpush1.bf16.msra.mxu0 %v557
    %696 = vmatprep.subr.bf16.mxu0 %v560
    %697 = vmatpush1.bf16.msra.mxu0 %v559
    %698 = vmatprep.subr.bf16.mxu0 %v562
    %699 = vmatpush1.bf16.msra.mxu0 %v561
    %700 = vmatprep.subr.bf16.mxu0 %v564
    %701 = vmatpush1.bf16.msra.mxu0 %v563
    %702 = vmatprep.subr.bf16.mxu0 %v566
    %703 = vmatpush1.bf16.msra.mxu0 %v565
    %704 = vmatprep.subr.bf16.mxu0 %v568
    %705 = vmatpush1.bf16.msra.mxu0 %v567
    %706 = vmatprep.subr.bf16.mxu0 %v570
    %707 = vmatpush1.bf16.msra.mxu0 %v569
    %708 = vmatprep.mubr.bf16.mxu0 %v238
    %709 = vmatmul.mubr.bf16.gmra.mrb[0].mxu0 %v237
    %v710 = vpop.f32.mrb[0].mxu0
    %v711 = vadd.f32 %v670, %v710
    %v712 = vpop.f32.mrb[0].mxu0
    %v713 = vadd.f32 %v672, %v712
    %v714 = vpop.f32.mrb[0].mxu0
    %v715 = vpop.f32.mrb[0].mxu0
    %716 = vdwg.mxu0
    %v717 = vmax.f32 %v711, 0.0
    %v718 = vmax.f32 %v713, 0.0
    %v719 = vpack.c.bf16 %v717, %v717
    %v720 = vpack.c.bf16 %v718, %v718
    %v721 = vld [vmem:[#allocation7] sm:$0xf]
    %v722 = vld [vmem:[#allocation7 + $0x4] sm:$0xf]
    %v723 = vld [vmem:[#allocation7 + $0x8] sm:$0xf]
    %v724 = vld [vmem:[#allocation7 + $0xc] sm:$0xf]
    %v725 = vld [vmem:[#allocation7 + $0x10] sm:$0xf]
    %v726 = vld [vmem:[#allocation7 + $0x14] sm:$0xf]
    %v727 = vld [vmem:[#allocation7 + $0x18] sm:$0xf]
    %v728 = vld [vmem:[#allocation7 + $0x1c] sm:$0xf]
    %v729 = vld [vmem:[#allocation7 + $0x20] sm:$0xf]
    %v730 = vld [vmem:[#allocation7 + $0x24] sm:$0xf]
    %v731 = vld [vmem:[#allocation7 + $0x28] sm:$0xf]
    %v732 = vld [vmem:[#allocation7 + $0x2c] sm:$0xf]
    %v733 = vld [vmem:[#allocation7 + $0x30] sm:$0xf]
    %v734 = vld [vmem:[#allocation7 + $0x34] sm:$0xf]
    %v735 = vld [vmem:[#allocation7 + $0x38] sm:$0xf]
    %v736 = vld [vmem:[#allocation7 + $0x3c] sm:$0xf]
    %v737 = vld [vmem:[#allocation7 + $0x40] sm:$0xf]
    %v738 = vld [vmem:[#allocation7 + $0x44] sm:$0xf]
    %v739 = vld [vmem:[#allocation7 + $0x48] sm:$0xf]
    %v740 = vld [vmem:[#allocation7 + $0x4c] sm:$0xf]
    %v741 = vld [vmem:[#allocation7 + $0x50] sm:$0xf]
    %v742 = vld [vmem:[#allocation7 + $0x54] sm:$0xf]
    %v743 = vld [vmem:[#allocation7 + $0x58] sm:$0xf]
    %v744 = vld [vmem:[#allocation7 + $0x5c] sm:$0xf]
    %v745 = vld [vmem:[#allocation7 + $0x60] sm:$0xf]
    %v746 = vld [vmem:[#allocation7 + $0x64] sm:$0xf]
    %v747 = vld [vmem:[#allocation7 + $0x68] sm:$0xf]
    %v748 = vld [vmem:[#allocation7 + $0x6c] sm:$0xf]
    %v749 = vld [vmem:[#allocation7 + $0x70] sm:$0xf]
    %v750 = vld [vmem:[#allocation7 + $0x74] sm:$0xf]
    %v751 = vld [vmem:[#allocation7 + $0x78] sm:$0xf]
    %v752 = vld [vmem:[#allocation7 + $0x7c] sm:$0xf]
    %v753 = vld [vmem:[%s6] sm:$0x1]
    %v755 = vlaneseq
    %v756 = vshrl.u32 %v755, 7
    %v757 = vsub.s32 0, %v756
    %v758 = vrot.slane %v753, %v757
    %v792 = vunpack.c.l.b16 %v721
    %v793 = vunpack.c.l.b16 %v722
    %v794 = vunpack.c.l.b16 %v723
    %v795 = vunpack.c.l.b16 %v724
    %v796 = vunpack.c.l.b16 %v725
    %v797 = vunpack.c.l.b16 %v726
    %v798 = vunpack.c.l.b16 %v727
    %v799 = vunpack.c.l.b16 %v728
    %v800 = vunpack.c.l.b16 %v729
    %v801 = vunpack.c.l.b16 %v730
    %v802 = vunpack.c.l.b16 %v731
    %v803 = vunpack.c.l.b16 %v732
    %v804 = vunpack.c.l.b16 %v733
    %v805 = vunpack.c.l.b16 %v734
    %v806 = vunpack.c.l.b16 %v735
    %v807 = vunpack.c.l.b16 %v736
    %v808 = vunpack.c.l.b16 %v737
    %v809 = vunpack.c.l.b16 %v738
    %v810 = vunpack.c.l.b16 %v739
    %v811 = vunpack.c.l.b16 %v740
    %v812 = vunpack.c.l.b16 %v741
    %v813 = vunpack.c.l.b16 %v742
    %v814 = vunpack.c.l.b16 %v743
    %v815 = vunpack.c.l.b16 %v744
    %v816 = vunpack.c.l.b16 %v745
    %v817 = vunpack.c.l.b16 %v746
    %v818 = vunpack.c.l.b16 %v747
    %v819 = vunpack.c.l.b16 %v748
    %v820 = vunpack.c.l.b16 %v749
    %v821 = vunpack.c.l.b16 %v750
    %v822 = vunpack.c.l.b16 %v751
    %v823 = vunpack.c.l.b16 %v752
    %v824 = vpack.c.b16 %v793, %v792
    %v825 = vpack.c.b16 %v795, %v794
    %v826 = vpack.c.b16 %v797, %v796
    %v827 = vpack.c.b16 %v799, %v798
    %v828 = vpack.c.b16 %v801, %v800
    %v829 = vpack.c.b16 %v803, %v802
    %v830 = vpack.c.b16 %v805, %v804
    %v831 = vpack.c.b16 %v807, %v806
    %v832 = vpack.c.b16 %v809, %v808
    %v833 = vpack.c.b16 %v811, %v810
    %v834 = vpack.c.b16 %v813, %v812
    %v835 = vpack.c.b16 %v815, %v814
    %v836 = vpack.c.b16 %v817, %v816
    %v837 = vpack.c.b16 %v819, %v818
    %v838 = vpack.c.b16 %v821, %v820
    %v839 = vpack.c.b16 %v823, %v822
    %856 = vmatprep.subr.bf16.mxu0 0
    %857 = vmatpush1.bf16.msra.mxu0 %v824
    %858 = vmatprep.subr.bf16.mxu0 0
    %859 = vmatpush1.bf16.msra.mxu0 %v825
    %860 = vmatprep.subr.bf16.mxu0 0
    %861 = vmatpush1.bf16.msra.mxu0 %v826
    %862 = vmatprep.subr.bf16.mxu0 0
    %863 = vmatpush1.bf16.msra.mxu0 %v827
    %864 = vmatprep.subr.bf16.mxu0 0
    %865 = vmatpush1.bf16.msra.mxu0 %v828
    %866 = vmatprep.subr.bf16.mxu0 0
    %867 = vmatpush1.bf16.msra.mxu0 %v829
    %868 = vmatprep.subr.bf16.mxu0 0
    %869 = vmatpush1.bf16.msra.mxu0 %v830
    %870 = vmatprep.subr.bf16.mxu0 0
    %871 = vmatpush1.bf16.msra.mxu0 %v831
    %872 = vmatprep.subr.bf16.mxu0 0
    %873 = vmatpush1.bf16.msra.mxu0 %v832
    %874 = vmatprep.subr.bf16.mxu0 0
    %875 = vmatpush1.bf16.msra.mxu0 %v833
    %876 = vmatprep.subr.bf16.mxu0 0
    %877 = vmatpush1.bf16.msra.mxu0 %v834
    %878 = vmatprep.subr.bf16.mxu0 0
    %879 = vmatpush1.bf16.msra.mxu0 %v835
    %880 = vmatprep.subr.bf16.mxu0 0
    %881 = vmatpush1.bf16.msra.mxu0 %v836
    %882 = vmatprep.subr.bf16.mxu0 0
    %883 = vmatpush1.bf16.msra.mxu0 %v837
    %884 = vmatprep.subr.bf16.mxu0 0
    %885 = vmatpush1.bf16.msra.mxu0 %v838
    %886 = vmatprep.subr.bf16.mxu0 0
    %887 = vmatpush1.bf16.msra.mxu0 %v839
    %888 = vmatprep.mubr.bf16.mxu0 %v720
    %889 = vmatmul.mubr.bf16.gmra.mrb[0].mxu0 %v719
    %v890 = vpop.f32.mrb[0].mxu0
    %v891 = vadd.f32 %v758, %v890
    %v892 = vpop.f32.mrb[0].mxu0
    %v893 = vpop.f32.mrb[0].mxu0
    %v894 = vpop.f32.mrb[0].mxu0
    %895 = vdwg.mxu0
    %v896 = vmax.f32 %v891, 0.0
    %v897 = vpack.c.bf16 %v896, %v896
    %v898 = vld [vmem:[%s7] sm:$0xf]
    %v899 = vld [vmem:[%s7 + $0x4] sm:$0xf]
    %v900 = vld [vmem:[%s7 + $0x8] sm:$0xf]
    %v901 = vld [vmem:[%s7 + $0xc] sm:$0xf]
    %v902 = vld [vmem:[%s7 + $0x10] sm:$0xf]
    %v903 = vld [vmem:[%s7 + $0x14] sm:$0xf]
    %v904 = vld [vmem:[%s7 + $0x18] sm:$0xf]
    %v905 = vld [vmem:[%s7 + $0x1c] sm:$0xf]
    %v906 = vld [vmem:[%s7 + $0x20] sm:$0xf]
    %v907 = vld [vmem:[%s7 + $0x24] sm:$0xf]
    %v908 = vld [vmem:[%s7 + $0x28] sm:$0xf]
    %v909 = vld [vmem:[%s7 + $0x2c] sm:$0xf]
    %v910 = vld [vmem:[%s7 + $0x30] sm:$0xf]
    %v911 = vld [vmem:[%s7 + $0x34] sm:$0xf]
    %v912 = vld [vmem:[%s7 + $0x38] sm:$0xf]
    %v913 = vld [vmem:[%s7 + $0x3c] sm:$0xf]
    %v914 = vld [vmem:[%s8] sm:$0x1]
    %v916 = vlaneseq
    %v917 = vshrl.u32 %v916, 7
    %v918 = vsub.s32 0, %v917
    %v919 = vrot.slane %v914, %v918
    %v937 = vunpack.c.l.b16 %v898
    %v938 = vunpack.c.l.b16 %v899
    %v939 = vunpack.c.l.b16 %v900
    %v940 = vunpack.c.l.b16 %v901
    %v941 = vunpack.c.l.b16 %v902
    %v942 = vunpack.c.l.b16 %v903
    %v943 = vunpack.c.l.b16 %v904
    %v944 = vunpack.c.l.b16 %v905
    %v945 = vunpack.c.l.b16 %v906
    %v946 = vunpack.c.l.b16 %v907
    %v947 = vunpack.c.l.b16 %v908
    %v948 = vunpack.c.l.b16 %v909
    %v949 = vunpack.c.l.b16 %v910
    %v950 = vunpack.c.l.b16 %v911
    %v951 = vunpack.c.l.b16 %v912
    %v952 = vunpack.c.l.b16 %v913
    %v953 = vpack.c.b16 %v938, %v937
    %v954 = vpack.c.b16 %v940, %v939
    %v955 = vpack.c.b16 %v942, %v941
    %v956 = vpack.c.b16 %v944, %v943
    %v957 = vpack.c.b16 %v946, %v945
    %v958 = vpack.c.b16 %v948, %v947
    %v959 = vpack.c.b16 %v950, %v949
    %v960 = vpack.c.b16 %v952, %v951
    %969 = vmatprep.subr.bf16.mxu0 0
    %970 = vmatpush1.bf16.msra.mxu0 %v953
    %971 = vmatprep.subr.bf16.mxu0 0
    %972 = vmatpush1.bf16.msra.mxu0 %v954
    %973 = vmatprep.subr.bf16.mxu0 0
    %974 = vmatpush1.bf16.msra.mxu0 %v955
    %975 = vmatprep.subr.bf16.mxu0 0
    %976 = vmatpush1.bf16.msra.mxu0 %v956
    %977 = vmatprep.subr.bf16.mxu0 0
    %978 = vmatpush1.bf16.msra.mxu0 %v957
    %979 = vmatprep.subr.bf16.mxu0 0
    %980 = vmatpush1.bf16.msra.mxu0 %v958
    %981 = vmatprep.subr.bf16.mxu0 0
    %982 = vmatpush1.bf16.msra.mxu0 %v959
    %983 = vmatprep.subr.bf16.mxu0 0
    %984 = vmatpush1.bf16.msra.mxu0 %v960
    %985 = vmatprep.subr.bf16.mxu0 0
    %986 = vmatpush1.bf16.msra.mxu0 0
    %987 = vmatprep.subr.bf16.mxu0 0
    %988 = vmatpush1.bf16.msra.mxu0 0
    %989 = vmatprep.subr.bf16.mxu0 0
    %990 = vmatpush1.bf16.msra.mxu0 0
    %991 = vmatprep.subr.bf16.mxu0 0
    %992 = vmatpush1.bf16.msra.mxu0 0
    %993 = vmatprep.subr.bf16.mxu0 0
    %994 = vmatpush1.bf16.msra.mxu0 0
    %995 = vmatprep.subr.bf16.mxu0 0
    %996 = vmatpush1.bf16.msra.mxu0 0
    %997 = vmatprep.subr.bf16.mxu0 0
    %998 = vmatpush1.bf16.msra.mxu0 0
    %999 = vmatprep.subr.bf16.mxu0 0
    %1000 = vmatpush1.bf16.msra.mxu0 0
    %1001 = vmatprep.mubr.bf16.mxu0 0
    %1002 = vmatmul.mubr.bf16.gmra.mrb[0].mxu0 %v897
    %v1003 = vpop.f32.mrb[0].mxu0
    %v1004 = vadd.f32 %v919, %v1003
    %v1005 = vpop.f32.mrb[0].mxu0
    %v1006 = vpop.f32.mrb[0].mxu0
    %v1007 = vpop.f32.mrb[0].mxu0
    %1008 = vdwg.mxu0
    %vm1009 = vcmask 64512
    %v1010 = vsel %vm1009, %v1004, -inf
    %1011 = vmax.xlane.f32.xlu0 %v1010
    %v1012 = vpop.xlane.xlu0 %1011
    %v1013 = vsub.f32 %v1004, %v1012
    %v1014 = vmul.f32 %v1013, 1.442695
    %v1015 = vpow.pop %v1014
    %v1016 = vsel %vm1009, %v1015, 0.0
    %1017 = vadd.xlane.f32.xlu0 %v1016
    %v1018 = vpop.xlane.xlu0 %1017
    %v1019 = vrcp.pop %v1018
    %v1020 = vmul.f32 %v1015, %v1019
    %1021 = vst.msk [vmem:[#allocation8] sm:$0xff] %vm1009, %v1020
    // Predicated region
    $region50: #{tpu_custom_call.1} parent=1 // pred_check
      _
    $region51: #{tpu_custom_call.1} parent=1 // pred_check_branch
      %1023 = sbr.rel (0) target = $region53
    $region52: #{tpu_custom_call.1} parent=1 // pred_region
      %s1025 = ssub.s32 128, 128
      %1026 = vsyncadd [#allocation4], %s1025
      %s1028 = sshll.u32 [#allocation8], 4
      %s1029 = int_to_ptr.vmem [resolvable:$true] %s1028
      %1031 = dma.vmem_to_hbm [thread:$0]  %s1029, 128, %s9, [#allocation4]
    $region53: #{tpu_custom_call.1} parent=1 // pred_fallthru
      _
    // Predicated region
    $region54: #{tpu_custom_call.1} parent=1 // pred_check
      _
    $region55: #{tpu_custom_call.1} parent=1 // pred_check_branch
      %1033 = sbr.rel (0) target = $region57
    $region56: #{tpu_custom_call.1} parent=1 // pred_region
      %1034 = dma.done [#allocation4], 128
    $region57: #{tpu_custom_call.1} parent=1 // pred_fallthru
      _
    %1035 = vsyncpa [#allocation3], 1
    %1036 = vsyncpa [#allocation6], 1
    %1037 = vsyncpa [#allocation4], 1

</llo_original>
